<compile_context>
chip_gen: v5e
topology: v5e:2x2
jax: 0.10.0
libtpu: 0.0.40
codegen_flags: <defaults>
</compile_context>

<pallas_src>
import functools

import jax
import jax.numpy as jnp
from jax.experimental import pallas as pl
from jax.experimental.pallas import tpu as pltpu

# f32 keeps parity with the PyTorch reference; at production channel counts
# switch to jnp.bfloat16 on v6e/v7x to halve HBM->VMEM bytes (the dot still
# accumulates in f32 and the bias add / store stay f32).
_COMPUTE_DTYPE = jnp.float32


def _conv1x1_bn_kernel(x_ref, w_ref, shift_ref, o_ref):
    # x_ref: (Cin, TM) pixels on lanes; w_ref: (Cout, Cin); shift_ref: (Cout, 1)
    y = jnp.dot(w_ref[...], x_ref[...], preferred_element_type=jnp.float32)
    o_ref[...] = (y + shift_ref[...]).astype(o_ref.dtype)


def _conv1x1_bn_matmul(x2d, w_folded, shift):
    """out2d = w_folded @ x2d + shift[:, None]  for x2d: (Cin, M) -> (Cout, M)."""
    cin, m = x2d.shape
    cout = w_folded.shape[0]

    # Lane-dense tiling along the pixel axis: pad M to a multiple of the tile
    # and keep at least 2 grid steps ("parallel") so a v7x chip can split the
    # work across its two TensorCores (one step per core is still ~free on
    # v5e/v6e at these sizes).
    tm = 128 if m <= 1024 else 512
    n_tiles = max(2, pl.cdiv(m, tm))
    mp = n_tiles * tm
    if mp != m:
        x2d = jnp.pad(x2d, ((0, 0), (0, mp - m)))

    out = pl.pallas_call(
        _conv1x1_bn_kernel,
        out_shape=jax.ShapeDtypeStruct((cout, mp), jnp.float32),
        grid_spec=pltpu.PrefetchScalarGridSpec(
            num_scalar_prefetch=0,
            grid=(n_tiles,),
            in_specs=[
                pl.BlockSpec((cin, tm), lambda i: (0, i)),     # activations
                pl.BlockSpec((cout, cin), lambda i: (0, 0)),   # folded weight (resident)
                pl.BlockSpec((cout, 1), lambda i: (0, 0)),     # folded BN shift (resident)
            ],
            out_specs=pl.BlockSpec((cout, tm), lambda i: (0, i)),
        ),
        compiler_params=pltpu.CompilerParams(
            dimension_semantics=("parallel",)),
    )(
        x2d.astype(_COMPUTE_DTYPE),
        w_folded.astype(_COMPUTE_DTYPE),
        shift.reshape(cout, 1).astype(jnp.float32),
    )
    return out[:, :m]


def _maybe_crop(x_nchw):
    # pysot AdjustLayer crops the conv OUTPUT to 7x7 when its width < 20; a
    # 1x1 conv preserves spatial size and commutes with the crop, so crop the
    # INPUT instead (numerically identical, ~5x less work for 16x16 inputs).
    if x_nchw.shape[3] < 20:
        x_nchw = x_nchw[:, :, 4:11, 4:11]
    return x_nchw


def _branch_forward(x_nchw, w_folded, shift):
    x_nchw = _maybe_crop(x_nchw)
    n, cin, h, w = x_nchw.shape
    m = n * h * w
    x2d = jnp.transpose(x_nchw, (1, 0, 2, 3)).reshape(cin, m)
    out2d = _conv1x1_bn_matmul(x2d, w_folded, shift)
    cout = w_folded.shape[0]
    return jnp.transpose(out2d.reshape(cout, n, h, w), (1, 0, 2, 3))


def _fused_forward(features, w_bd, shift_cat, out_channels):
    # All branches share (N, H, W): fuse them into one matmul with a
    # block-diagonal folded weight -> a single pallas_call for the whole neck.
    features = [_maybe_crop(f) for f in features]
    n, _, h, w = features[0].shape
    m = n * h * w
    x2d = jnp.concatenate(
        [jnp.transpose(f, (1, 0, 2, 3)).reshape(f.shape[1], m) for f in features],
        axis=0)
    out2d = _conv1x1_bn_matmul(x2d, w_bd, shift_cat)
    outs = []
    off = 0
    for cout in out_channels:
        o = out2d[off:off + cout].reshape(cout, n, h, w)
        outs.append(jnp.transpose(o, (1, 0, 2, 3)))
        off += cout
    return outs


def _fold_bn(weight_oihw, gamma, beta, running_mean, running_var, eps=1e-5):
    cout, cin = weight_oihw.shape[:2]
    scale = gamma / jnp.sqrt(running_var + eps)                 # (Cout,)
    w_folded = weight_oihw.reshape(cout, cin) * scale[:, None]  # (Cout, Cin)
    shift = beta - running_mean * scale                         # (Cout,)
    return w_folded.astype(jnp.float32), shift.astype(jnp.float32)


class AdjustAllLayer:
    """JAX/Pallas re-implementation of pysot AdjustAllLayer (forward only)."""

    def __init__(self, in_channels, out_channels, key, eps=1e-5):
        assert len(in_channels) == len(out_channels)
        self.num = len(out_channels)
        self.in_channels = tuple(in_channels)
        self.out_channels = tuple(out_channels)

        # Per-branch folded parameters (inference constants).
        self.branches = []  # list of (w_folded (Cout, Cin), shift (Cout,))
        for i, (cin, cout) in enumerate(zip(in_channels, out_channels)):
            k_w, k_g, k_b, k_m, k_v = jax.random.split(jax.random.fold_in(key, i), 5)
            weight = jax.random.normal(k_w, (cout, cin, 1, 1), jnp.float32) * 0.05
            gamma = 1.0 + 0.1 * jax.random.normal(k_g, (cout,), jnp.float32)
            beta = 0.1 * jax.random.normal(k_b, (cout,), jnp.float32)
            running_mean = 0.1 * jax.random.normal(k_m, (cout,), jnp.float32)
            running_var = 1.0 + 0.1 * jax.random.uniform(k_v, (cout,), jnp.float32)
            self.branches.append(
                _fold_bn(weight, gamma, beta, running_mean, running_var, eps))

        if self.num > 1:
            # Block-diagonal folded weight so every branch runs in ONE pallas_call.
            cin_tot, cout_tot = sum(in_channels), sum(out_channels)
            w_bd = jnp.zeros((cout_tot, cin_tot), jnp.float32)
            ro = co = 0
            for (w_f, _), cin, cout in zip(self.branches, in_channels, out_channels):
                w_bd = w_bd.at[ro:ro + cout, co:co + cin].set(w_f)
                ro += cout
                co += cin
            self.w_bd = w_bd
            self.shift_cat = jnp.concatenate([s for _, s in self.branches])
            self._fused_fn = jax.jit(
                functools.partial(_fused_forward, out_channels=self.out_channels))
        self._single_fn = jax.jit(_branch_forward)

    def __call__(self, features):
        if self.num == 1:
            w_f, shift = self.branches[0]
            return self._single_fn(features, w_f, shift)
        shapes = {(f.shape[0],) + f.shape[2:] for f in features}
        if len(shapes) == 1:
            return self._fused_fn(list(features), self.w_bd, self.shift_cat)
        # Fallback (mismatched spatial shapes): one call per branch.
        return [self._single_fn(f, w_f, s)
                for f, (w_f, s) in zip(features, self.branches)]


if __name__ == "__main__":
    key = jax.random.PRNGKey(0)
    k_params, k_x = jax.random.split(key)

    # Small config consistent with the module: 3 backbone stages.
    in_channels = [4, 8, 16]
    out_channels = [8, 8, 8]
    N, H, W = 2, 16, 16  # W < 20 -> outputs cropped to 7x7

    neck = AdjustAllLayer(in_channels, out_channels, k_params)

    feats = [
        jax.random.normal(jax.random.fold_in(k_x, i), (N, cin, H, W), jnp.float32)
        for i, cin in enumerate(in_channels)
    ]

    outs = neck(feats)
    outs = [jax.block_until_ready(o) for o in outs]

    # Shape check: (N, Cout, 7, 7) after the crop.
    for o, cout in zip(outs, out_channels):
        assert o.shape == (N, cout, 7, 7), o.shape

    # Pure-JAX reference check (folded conv1x1 + bias on the cropped input).
    for o, f, (w_f, s) in zip(outs, feats, neck.branches):
        fc = f[:, :, 4:11, 4:11]
        ref = jnp.einsum("oc,nchw->nohw", w_f, fc,
                         precision=jax.lax.Precision.HIGHEST)
        ref = ref + s[None, :, None, None]
        assert jnp.allclose(o, ref, atol=5e-3, rtol=5e-3), float(
            jnp.max(jnp.abs(o - ref)))

    print("KERNEL_OK")
</pallas_src>

<mosaic_0001>
module attributes {stable_mosaic.version = 11 : i64} {
  func.func @_conv1x1_bn_kernel(%arg0: i32, %arg1: memref<28x128xf32, #tpu.memory_space<vmem>>, %arg2: memref<24x28xf32, #tpu.memory_space<vmem>>, %arg3: memref<24x1xf32, #tpu.memory_space<vmem>>, %arg4: memref<24x128xf32, #tpu.memory_space<vmem>>) attributes {dimension_semantics = [#tpu.dimension_semantics<parallel>], iteration_bounds = array<i64: 2>, scalar_prefetch = 0 : i64, scratch_operands = 0 : i64, tpu.core_type = #tpu.core_type<tc>, window_params = [{transform_indices = @transform_0, window_bounds = array<i64: 28, 128>}, {pipeline_mode = #tpu.pipeline_mode<synchronous>, transform_indices = @transform_1, window_bounds = array<i64: 24, 28>}, {pipeline_mode = #tpu.pipeline_mode<synchronous>, transform_indices = @transform_2, window_bounds = array<i64: 24, 1>}, {transform_indices = @transform_3, window_bounds = array<i64: 24, 128>}]} {
    %c0 = arith.constant 0 : index
    %c0_0 = arith.constant 0 : index
    %0 = vector.load %arg2[%c0, %c0_0] : memref<24x28xf32, #tpu.memory_space<vmem>>, vector<24x28xf32>
    %c0_1 = arith.constant 0 : index
    %c0_2 = arith.constant 0 : index
    %1 = vector.load %arg1[%c0_1, %c0_2] : memref<28x128xf32, #tpu.memory_space<vmem>>, vector<28x128xf32>
    %cst = arith.constant dense<0.000000e+00> : vector<24x128xf32>
    %2 = tpu.matmul %0, %1, %cst {dimension_numbers = #tpu.dot_dimension_numbers<[1], [0], [0], [1], [0, 0, 1, 1], [], []>} : vector<24x28xf32>, vector<28x128xf32>, vector<24x128xf32> -> vector<24x128xf32>
    %c0_3 = arith.constant 0 : index
    %c0_4 = arith.constant 0 : index
    %3 = vector.load %arg3[%c0_3, %c0_4] : memref<24x1xf32, #tpu.memory_space<vmem>>, vector<24x1xf32>
    %4 = vector.broadcast %3 : vector<24x1xf32> to vector<24x128xf32>
    %5 = arith.addf %2, %4 : vector<24x128xf32>
    %c0_5 = arith.constant 0 : index
    %c0_6 = arith.constant 0 : index
    %6 = vector.load %arg4[%c0_5, %c0_6] : memref<24x128xf32, #tpu.memory_space<vmem>>, vector<24x128xf32>
    tpu.vector_store %arg4[%c0_5, %c0_6], %5 {strides = array<i32>} : memref<24x128xf32, #tpu.memory_space<vmem>>, vector<24x128xf32>,
    return
  }
  func.func @transform_0(%arg0: i32) -> (i32, i32) {
    %c0_i32 = arith.constant 0 : i32
    %c0_i32_0 = arith.constant 0 : i32
    return %c0_i32, %arg0 : i32, i32
  }
  func.func @transform_1(%arg0: i32) -> (i32, i32) {
    %c0_i32 = arith.constant 0 : i32
    %c0_i32_0 = arith.constant 0 : i32
    %c0_i32_1 = arith.constant 0 : i32
    return %c0_i32, %c0_i32_0 : i32, i32
  }
  func.func @transform_2(%arg0: i32) -> (i32, i32) {
    %c0_i32 = arith.constant 0 : i32
    %c0_i32_0 = arith.constant 0 : i32
    %c0_i32_1 = arith.constant 0 : i32
    return %c0_i32, %c0_i32_0 : i32, i32
  }
  func.func @transform_3(%arg0: i32) -> (i32, i32) {
    %c0_i32 = arith.constant 0 : i32
    %c0_i32_0 = arith.constant 0 : i32
    return %c0_i32, %arg0 : i32, i32
  }
}

</mosaic_0001>

<llo_original>
// kernel: _fused_forward.1
$region0: #{_fused_forward.1}
  #allocation0 [shape = 'u32[]', space=smem, size = 0x4, offset = 0x4, fixed_abs, tag = 'smem constant byte address 0x4 - core index']
  #allocation1 [shape = 'u32[72,128]{1,0:T(1,128)}', space=vmem, size = 0x9000, scoped, tag = 'internal scratch']
  %s0 = inlined_call_operand.vmem [shape: f32[28,256], index: 0, kind: input, shape index: {}]
  %s1 = inlined_call_operand.vmem [shape: f32[24,28], index: 1, kind: input, shape index: {}]
  %s2 = inlined_call_operand.vmem [shape: f32[24,1], index: 2, kind: input, shape index: {}]
  %s3 = inlined_call_operand.vmem [shape: f32[24,256], index: 3, kind: output, shape index: {}]
  %s4 = sld [smem:[#allocation0]]
  $region117: #{_fused_forward.1} parent=0
    _
  %s6 = ssub.s32 1, %s4
  %s7 = scalar_select 0, %s6, %s4
  $region1: #{_fused_forward.1} parent=0
    #allocation2 [shape = 'u8[32768]{0}', space=vmem, size = 0x8000, scoped, tag = 'input window, operand 0']
    #allocation3 [shape = 'u8[24576]{0}', space=vmem, size = 0x6000, scoped, tag = 'output window, operand 0']
    loop: start=0, step=1, limit=4
    $region2: #{_fused_forward.1} parent=1 // loop_pre_header
      _
    $region3: #{_fused_forward.1} parent=1 // loop_header
      %s9 = sphi 0, %s13
      %p10 = scmp.ge.s32.totalorder %s9, 4
      %s19 = sphi 0, %s21
      %s22 = sphi 0, %s19
      %s23 = sphi 0, %s22
      %s39 = sphi 0, %s23
      %s43 = sphi 0, %s43
      %s45 = sphi 0, %s43
      %s46 = sphi 0, %s45
      %s60 = sphi 0, %s46
      %s64 = sphi 0, %s64
      %s66 = sphi 0, %s64
      %s67 = sphi 0, %s66
      %s81 = sphi 0, %s67
      %s87 = sphi 0, %s89
      %s90 = sphi 0, %s87
      %s91 = sphi 0, %s90
      %s107 = sphi 0, %s91
    $region4: #{_fused_forward.1} parent=1 // loop_header_branch
      %12 = sbr.rel (%p10) target = $region8
    $region5: #{_fused_forward.1} parent=1 // loop_body
      %s14 = ssub.s32 %s9, 1
      %s15 = ssub.s32 %s9, 2
      %s16 = sadd.s32 %s9, 1
      %s17 = ssub.s32 %s9, %s16
      %p18 = scmp.eq.s32.totalorder %s17, 0
      %s20 = sadd.s32 %s19, 1
      %s21 = scalar_select %p18, %s19, %s20
      %p24 = pneg %p18
      %p25 = scmp.eq.s32.totalorder %s9, 1
      %p26 = por %p24, %p25
      %p27 = scmp.ne.s32.totalorder %s19, %s22
      %p28 = scmp.eq.s32.totalorder %s9, 0
      %p29 = por %p27, %p28
      %p30 = scmp.ne.s32.totalorder %s19, %s22
      %p31 = scmp.eq.s32.totalorder %s14, 1
      %p32 = por %p30, %p31
      %p33 = scmp.ne.s32.totalorder %s22, %s23
      %p34 = scmp.eq.s32.totalorder %s14, 0
      %p35 = por %p33, %p34
      %p36 = scmp.ne.s32.totalorder %s22, %s23
      %p37 = scmp.eq.s32.totalorder %s15, 1
      %p38 = por %p36, %p37
      %p40 = scmp.ne.s32.totalorder %s23, %s39
      %p41 = scmp.eq.s32.totalorder %s15, 0
      %p42 = por %p40, %p41
      %s44 = sadd.s32 %s43, 1
      %p47 = scmp.eq.s32.totalorder %s9, 1
      %p48 = scmp.ne.s32.totalorder %s43, %s45
      %p49 = scmp.eq.s32.totalorder %s9, 0
      %p50 = por %p48, %p49
      %p51 = scmp.ne.s32.totalorder %s43, %s45
      %p52 = scmp.eq.s32.totalorder %s14, 1
      %p53 = por %p51, %p52
      %p54 = scmp.ne.s32.totalorder %s45, %s46
      %p55 = scmp.eq.s32.totalorder %s14, 0
      %p56 = por %p54, %p55
      %p57 = scmp.ne.s32.totalorder %s45, %s46
      %p58 = scmp.eq.s32.totalorder %s15, 1
      %p59 = por %p57, %p58
      %p61 = scmp.ne.s32.totalorder %s46, %s60
      %p62 = scmp.eq.s32.totalorder %s15, 0
      %p63 = por %p61, %p62
      %s65 = sadd.s32 %s64, 1
      %p68 = scmp.eq.s32.totalorder %s9, 1
      %p69 = scmp.ne.s32.totalorder %s64, %s66
      %p70 = scmp.eq.s32.totalorder %s9, 0
      %p71 = por %p69, %p70
      %p72 = scmp.ne.s32.totalorder %s64, %s66
      %p73 = scmp.eq.s32.totalorder %s14, 1
      %p74 = por %p72, %p73
      %p75 = scmp.ne.s32.totalorder %s66, %s67
      %p76 = scmp.eq.s32.totalorder %s14, 0
      %p77 = por %p75, %p76
      %p78 = scmp.ne.s32.totalorder %s66, %s67
      %p79 = scmp.eq.s32.totalorder %s15, 1
      %p80 = por %p78, %p79
      %p82 = scmp.ne.s32.totalorder %s67, %s81
      %p83 = scmp.eq.s32.totalorder %s15, 0
      %p84 = por %p82, %p83
      %s85 = ssub.s32 %s9, %s16
      %p86 = scmp.eq.s32.totalorder %s85, 0
      %s88 = sadd.s32 %s87, 1
      %s89 = scalar_select %p86, %s87, %s88
      %p92 = pneg %p86
      %p93 = scmp.eq.s32.totalorder %s9, 1
      %p94 = por %p92, %p93
      %p95 = scmp.ne.s32.totalorder %s87, %s90
      %p96 = scmp.eq.s32.totalorder %s9, 0
      %p97 = por %p95, %p96
      %p98 = scmp.ne.s32.totalorder %s87, %s90
      %p99 = scmp.eq.s32.totalorder %s14, 1
      %p100 = por %p98, %p99
      %p101 = scmp.ne.s32.totalorder %s90, %s91
      %p102 = scmp.eq.s32.totalorder %s14, 0
      %p103 = por %p101, %p102
      %p104 = scmp.ne.s32.totalorder %s90, %s91
      %p105 = scmp.eq.s32.totalorder %s15, 1
      %p106 = por %p104, %p105
      %p108 = scmp.ne.s32.totalorder %s91, %s107
      %p109 = scmp.eq.s32.totalorder %s15, 0
      %p110 = por %p108, %p109
      %p111 = scmp.le.s32.totalorder 1, %s9
      %p112 = scmp.lt.s32.totalorder %s9, 3
      %p113 = pnand %p111, %p112
      %p114 = pneg %p113
      // Predicated region
      $region9: #{_fused_forward.1} parent=5 // pred_check
        _
      $region10: #{_fused_forward.1} parent=5 // pred_check_branch
        %116 = sbr.rel (%p113) target = $region12
      $region11: #{_fused_forward.1} parent=5 // pred_region
        %s117 = ssub.s32 %s9, 1
        // Predicated region
        $region13: #{_fused_forward.1} parent=11 // pred_check
          %p118 = pneg %p56
        $region14: #{_fused_forward.1} parent=11 // pred_check_branch
          %120 = sbr.rel (%p118) target = $region16
        $region15: #{_fused_forward.1} parent=11 // pred_region
          _
        $region16: #{_fused_forward.1} parent=11 // pred_fallthru
          _
        // Predicated region
        $region17: #{_fused_forward.1} parent=11 // pred_check
          %p121 = pneg %p77
        $region18: #{_fused_forward.1} parent=11 // pred_check_branch
          %123 = sbr.rel (%p121) target = $region20
        $region19: #{_fused_forward.1} parent=11 // pred_region
          _
        $region20: #{_fused_forward.1} parent=11 // pred_fallthru
          _
      $region12: #{_fused_forward.1} parent=5 // pred_fallthru
        _
      %p124 = scmp.lt.s32.totalorder %s9, 2
      // Predicated region
      $region21: #{_fused_forward.1} parent=5 // pred_check
        %p125 = pneg %p124
      $region22: #{_fused_forward.1} parent=5 // pred_check_branch
        %127 = sbr.rel (%p125) target = $region24
      $region23: #{_fused_forward.1} parent=5 // pred_region
        // Predicated region
        $region25: #{_fused_forward.1} parent=23 // pred_check
          %p128 = pneg %p29
        $region26: #{_fused_forward.1} parent=23 // pred_check_branch
          %130 = sbr.rel (%p128) target = $region28
        $region27: #{_fused_forward.1} parent=23 // pred_region
          %s131 = sand.u32 %s19, 1
          %s132 = sand.u32 %s19, 1
          %s133 = smul.addr %s132, 32
          %s134 = scalar_lea.vmem [#allocation2], %s133
          %s135 = smul.addr %s9, 8
          %s136 = scalar_lea.vmem %s0, %s135
          // Predicated region
          $region29: #{_fused_forward.1} parent=27 // pred_check
            _
          $region30: #{_fused_forward.1} parent=27 // pred_check_branch
            %138 = sbr.rel (0) target = $region32
          $region31: #{_fused_forward.1} parent=27 // pred_region
            // Predicated region
            $region33: #{_fused_forward.1} parent=31 // pred_check
              _
            $region34: #{_fused_forward.1} parent=31 // pred_check_branch
              %140 = sbr.rel (0) target = $region36
            $region35: #{_fused_forward.1} parent=31 // pred_region
              // Predicated region
              $region48: #{_fused_forward.1} parent=35 // pred_check
                _
              $region49: #{_fused_forward.1} parent=35 // pred_check_branch
                %162 = sbr.rel (0) target = $region51
              $region50: #{_fused_forward.1} parent=35 // pred_region
                loop: start=0, step=1, limit=1
                $region52: #{_fused_forward.1} parent=50 // loop_pre_header
                  _
                $region53: #{_fused_forward.1} parent=50 // loop_header
                  %s164 = sphi 0, %s168
                  %p165 = scmp.ge.s32.totalorder %s164, 1
                  %s169 = sphi %s136, %s136
                  %s170 = sphi %s134, %s134
                $region54: #{_fused_forward.1} parent=50 // loop_header_branch
                  %167 = sbr.rel (%p165) target = $region58
                $region55: #{_fused_forward.1} parent=50 // loop_body
                  %v171 = vld [vmem:[%s169] sm:$0xff]
                  %172 = vst [vmem:[%s170] sm:$0xff] %v171
                  %v173 = vld [vmem:[%s169 + $0x10] sm:$0xff]
                  %174 = vst [vmem:[%s170 + $0x8] sm:$0xff] %v173
                  %v175 = vld [vmem:[%s169 + $0x20] sm:$0xff]
                  %176 = vst [vmem:[%s170 + $0x10] sm:$0xff] %v175
                  %v177 = vld [vmem:[%s169 + $0x30] sm:$0xff]
                  %178 = vst [vmem:[%s170 + $0x18] sm:$0xff] %v177
                $region56: #{_fused_forward.1} parent=50 // loop_footer
                  %s168 = sadd.s32 1, %s164
                $region57: #{_fused_forward.1} parent=50 // loop_footer_branch
                  %163 = sbr.rel target = $region53
                $region58: #{_fused_forward.1} parent=50 // loop_exit
                  _
              $region51: #{_fused_forward.1} parent=35 // pred_fallthru
                _
              // Predicated region
              $region59: #{_fused_forward.1} parent=35 // pred_check
                _
              $region60: #{_fused_forward.1} parent=35 // pred_check_branch
                %180 = sbr.rel target = $region62
              $region61: #{_fused_forward.1} parent=35 // pred_region
                _
              $region62: #{_fused_forward.1} parent=35 // pred_fallthru
                _
            $region36: #{_fused_forward.1} parent=31 // pred_fallthru
              _
            // Predicated region
            $region37: #{_fused_forward.1} parent=31 // pred_check
              _
            $region38: #{_fused_forward.1} parent=31 // pred_check_branch
              %142 = sbr.rel target = $region40
            $region39: #{_fused_forward.1} parent=31 // pred_region
              %s144 = ssub.s32 256, 1
              loop: start=0, step=1, limit=1
              $region41: #{_fused_forward.1} parent=39 // loop_pre_header
                _
              $region42: #{_fused_forward.1} parent=39 // loop_header
                %s146 = sphi 0, %s150
                %p147 = scmp.ge.s32.totalorder %s146, 1
                %s151 = sphi %s136, %s136
                %s152 = sphi %s134, %s134
              $region43: #{_fused_forward.1} parent=39 // loop_header_branch
                %149 = sbr.rel (%p147) target = $region47
              $region44: #{_fused_forward.1} parent=39 // loop_body
                %v153 = vld [vmem:[%s151] sm:%s144]
                %154 = vst [vmem:[%s152] sm:%s144] %v153
                %v155 = vld [vmem:[%s151 + $0x10] sm:%s144]
                %156 = vst [vmem:[%s152 + $0x8] sm:%s144] %v155
                %v157 = vld [vmem:[%s151 + $0x20] sm:%s144]
                %158 = vst [vmem:[%s152 + $0x10] sm:%s144] %v157
                %v159 = vld [vmem:[%s151 + $0x30] sm:%s144]
                %160 = vst [vmem:[%s152 + $0x18] sm:%s144] %v159
              $region45: #{_fused_forward.1} parent=39 // loop_footer
                %s150 = sadd.s32 1, %s146
              $region46: #{_fused_forward.1} parent=39 // loop_footer_branch
                %145 = sbr.rel target = $region42
              $region47: #{_fused_forward.1} parent=39 // loop_exit
                _
            $region40: #{_fused_forward.1} parent=31 // pred_fallthru
              _
          $region32: #{_fused_forward.1} parent=27 // pred_fallthru
            _
          %181 = vnop
        $region28: #{_fused_forward.1} parent=23 // pred_fallthru
          _
      $region24: #{_fused_forward.1} parent=5 // pred_fallthru
        _
      %p182 = scmp.le.s32.totalorder 1, %s9
      %p183 = scmp.lt.s32.totalorder %s9, 3
      %p184 = pnand %p182, %p183
      %p185 = pneg %p184
      // Predicated region
      $region63: #{_fused_forward.1} parent=5 // pred_check
        _
      $region64: #{_fused_forward.1} parent=5 // pred_check_branch
        %187 = sbr.rel (%p184) target = $region66
      $region65: #{_fused_forward.1} parent=5 // pred_region
        %s188 = ssub.s32 %s9, 1
        %s189 = sand.u32 %s22, 1
        %s190 = sand.u32 %s22, 1
        %s191 = smul.addr %s190, 32
        %s192 = scalar_lea.vmem [#allocation2], %s191
        // Predicated region
        $region67: #{_fused_forward.1} parent=65 // pred_check
          %p193 = pneg %p35
        $region68: #{_fused_forward.1} parent=65 // pred_check_branch
          %195 = sbr.rel (%p193) target = $region70
        $region69: #{_fused_forward.1} parent=65 // pred_region
          _
        $region70: #{_fused_forward.1} parent=65 // pred_fallthru
          _
        %s196 = sand.u32 %s22, 1
        %s197 = sand.u32 %s22, 1
        %s198 = smul.addr %s197, 32
        %s199 = scalar_lea.vmem [#allocation2], %s198
        %p200 = pneg %p35
        %p201 = pneg %p32
        %p202 = pneg %p56
        %p203 = pneg %p53
        %p204 = pneg %p77
        %p205 = pneg %p74
        %p206 = pneg %p103
        %p207 = pneg %p100
        %s208 = sand.u32 %s90, 1
        %s209 = sand.u32 %s90, 1
        %s210 = smul.addr %s209, 24
        %s211 = scalar_lea.vmem [#allocation3], %s210
        %v212 = vld [vmem:[%s1] sm:$0xff]
        %v213 = vld [vmem:[%s1 + $0x8] sm:$0xff]
        %v214 = vld [vmem:[%s1 + $0x10] sm:$0xff]
        %v215 = vld [vmem:[%s192] sm:$0xff]
        %v216 = vld [vmem:[%s192 + $0x8] sm:$0xff]
        %v217 = vld [vmem:[%s192 + $0x10] sm:$0xff]
        %v218 = vld [vmem:[%s192 + $0x18] sm:$0xf]
        %v219 = vld [vmem:[%s2] sm:$0xff]
        %v220 = vld [vmem:[%s2 + $0x8] sm:$0xff]
        %v221 = vld [vmem:[%s2 + $0x10] sm:$0xff]
        %223 = vset.pattern.permute.xlu0 0
        %224 = vperm.xlu0 %223, %v219
        %v225 = vpop.permute.xlu0 %224
        %228 = vset.pattern.permute.xlu0 0
        %229 = vperm.xlu0 %228, %v220
        %v230 = vpop.permute.xlu0 %229
        %233 = vset.pattern.permute.xlu0 0
        %234 = vperm.xlu0 %233, %v221
        %v235 = vpop.permute.xlu0 %234
        %vm237 = vcmask 228352
        %v239 = vsel %vm237, %v212, 0
        %v242 = vsel %vm237, %v213, 0
        %v245 = vsel %vm237, %v214, 0
        %vm247 = vcmask 1043456
        %v249 = vsel %vm247, %v218, 0
        %251 = vmatpush.msra.mxu0 0.0
        %252 = vmatpush.msra.mxu0 0.0
        %253 = vmatpush.msra.mxu0 0.0
        %254 = vmatpush.msra.mxu0 0.0
        %255 = vmatpush.msra.mxu0 0.0
        %256 = vmatpush.msra.mxu0 0.0
        %257 = vmatpush.msra.mxu0 0.0
        %258 = vmatpush.msra.mxu0 0.0
        %259 = vmatpush.msra.mxu0 0.0
        %260 = vmatpush.msra.mxu0 0.0
        %261 = vmatpush.msra.mxu0 0.0
        %262 = vmatpush.msra.mxu0 0.0
        %263 = vmatpush.msra.mxu0 %v249
        %264 = vmatpush.msra.mxu0 %v217
        %265 = vmatpush.msra.mxu0 %v216
        %266 = vmatpush.msra.mxu0 %v215
        %267 = vmatmul.f32.gmra.mxu0 %v239
        %v268 = vpop.f32.mrf.mxu0
        %v269 = vadd.f32 %v225, %v268
        %270 = vmatmul.f32.gmra.mxu0 %v242
        %v271 = vpop.f32.mrf.mxu0
        %v272 = vadd.f32 %v230, %v271
        %273 = vmatmul.f32.gmra.mxu0 %v245
        %v274 = vpop.f32.mrf.mxu0
        %v275 = vadd.f32 %v235, %v274
        %276 = vdwg.mxu0
        %277 = vst [vmem:[%s211] sm:$0xff] %v269
        %278 = vst [vmem:[%s211 + $0x8] sm:$0xff] %v272
        %279 = vst [vmem:[%s211 + $0x10] sm:$0xff] %v275
        %s280 = sand.u32 %s90, 1
        %s281 = sand.u32 %s90, 1
        %s282 = smul.addr %s281, 24
        %s283 = scalar_lea.vmem [#allocation3], %s282
        // Predicated region
        $region71: #{_fused_forward.1} parent=65 // pred_check
          %p284 = pneg %p100
        $region72: #{_fused_forward.1} parent=65 // pred_check_branch
          %286 = sbr.rel (%p284) target = $region74
        $region73: #{_fused_forward.1} parent=65 // pred_region
          %s287 = smul.addr %s14, 8
          %s288 = scalar_lea.vmem %s3, %s287
          // Predicated region
          $region75: #{_fused_forward.1} parent=73 // pred_check
            _
          $region76: #{_fused_forward.1} parent=73 // pred_check_branch
            %290 = sbr.rel (0) target = $region78
          $region77: #{_fused_forward.1} parent=73 // pred_region
            // Predicated region
            $region79: #{_fused_forward.1} parent=77 // pred_check
              _
            $region80: #{_fused_forward.1} parent=77 // pred_check_branch
              %292 = sbr.rel (0) target = $region82
            $region81: #{_fused_forward.1} parent=77 // pred_region
              // Predicated region
              $region94: #{_fused_forward.1} parent=81 // pred_check
                _
              $region95: #{_fused_forward.1} parent=81 // pred_check_branch
                %312 = sbr.rel (0) target = $region97
              $region96: #{_fused_forward.1} parent=81 // pred_region
                loop: start=0, step=1, limit=1
                $region98: #{_fused_forward.1} parent=96 // loop_pre_header
                  _
                $region99: #{_fused_forward.1} parent=96 // loop_header
                  %s314 = sphi 0, %s318
                  %p315 = scmp.ge.s32.totalorder %s314, 1
                  %s319 = sphi %s283, %s283
                  %s320 = sphi %s288, %s288
                $region100: #{_fused_forward.1} parent=96 // loop_header_branch
                  %317 = sbr.rel (%p315) target = $region104
                $region101: #{_fused_forward.1} parent=96 // loop_body
                  %v321 = vld [vmem:[%s319] sm:$0xff]
                  %322 = vst [vmem:[%s320] sm:$0xff] %v321
                  %v323 = vld [vmem:[%s319 + $0x8] sm:$0xff]
                  %324 = vst [vmem:[%s320 + $0x10] sm:$0xff] %v323
                  %v325 = vld [vmem:[%s319 + $0x10] sm:$0xff]
                  %326 = vst [vmem:[%s320 + $0x20] sm:$0xff] %v325
                $region102: #{_fused_forward.1} parent=96 // loop_footer
                  %s318 = sadd.s32 1, %s314
                $region103: #{_fused_forward.1} parent=96 // loop_footer_branch
                  %313 = sbr.rel target = $region99
                $region104: #{_fused_forward.1} parent=96 // loop_exit
                  _
              $region97: #{_fused_forward.1} parent=81 // pred_fallthru
                _
              // Predicated region
              $region105: #{_fused_forward.1} parent=81 // pred_check
                _
              $region106: #{_fused_forward.1} parent=81 // pred_check_branch
                %328 = sbr.rel target = $region108
              $region107: #{_fused_forward.1} parent=81 // pred_region
                _
              $region108: #{_fused_forward.1} parent=81 // pred_fallthru
                _
            $region82: #{_fused_forward.1} parent=77 // pred_fallthru
              _
            // Predicated region
            $region83: #{_fused_forward.1} parent=77 // pred_check
              _
            $region84: #{_fused_forward.1} parent=77 // pred_check_branch
              %294 = sbr.rel target = $region86
            $region85: #{_fused_forward.1} parent=77 // pred_region
              %s296 = ssub.s32 256, 1
              loop: start=0, step=1, limit=1
              $region87: #{_fused_forward.1} parent=85 // loop_pre_header
                _
              $region88: #{_fused_forward.1} parent=85 // loop_header
                %s298 = sphi 0, %s302
                %p299 = scmp.ge.s32.totalorder %s298, 1
                %s303 = sphi %s283, %s283
                %s304 = sphi %s288, %s288
              $region89: #{_fused_forward.1} parent=85 // loop_header_branch
                %301 = sbr.rel (%p299) target = $region93
              $region90: #{_fused_forward.1} parent=85 // loop_body
                %v305 = vld [vmem:[%s303] sm:%s296]
                %306 = vst [vmem:[%s304] sm:%s296] %v305
                %v307 = vld [vmem:[%s303 + $0x8] sm:%s296]
                %308 = vst [vmem:[%s304 + $0x10] sm:%s296] %v307
                %v309 = vld [vmem:[%s303 + $0x10] sm:%s296]
                %310 = vst [vmem:[%s304 + $0x20] sm:%s296] %v309
              $region91: #{_fused_forward.1} parent=85 // loop_footer
                %s302 = sadd.s32 1, %s298
              $region92: #{_fused_forward.1} parent=85 // loop_footer_branch
                %297 = sbr.rel target = $region88
              $region93: #{_fused_forward.1} parent=85 // loop_exit
                _
            $region86: #{_fused_forward.1} parent=77 // pred_fallthru
              _
          $region78: #{_fused_forward.1} parent=73 // pred_fallthru
            _
          %329 = vnop
        $region74: #{_fused_forward.1} parent=65 // pred_fallthru
          _
      $region66: #{_fused_forward.1} parent=5 // pred_fallthru
        _
      %p330 = scmp.le.s32.totalorder 2, %s9
      // Predicated region
      $region109: #{_fused_forward.1} parent=5 // pred_check
        %p331 = pneg %p330
      $region110: #{_fused_forward.1} parent=5 // pred_check_branch
        %333 = sbr.rel (%p331) target = $region112
      $region111: #{_fused_forward.1} parent=5 // pred_region
        %s334 = ssub.s32 %s9, 2
        // Predicated region
        $region113: #{_fused_forward.1} parent=111 // pred_check
          %p335 = pneg %p106
        $region114: #{_fused_forward.1} parent=111 // pred_check_branch
          %337 = sbr.rel (%p335) target = $region116
        $region115: #{_fused_forward.1} parent=111 // pred_region
          %s338 = sand.u32 %s91, 1
          %s339 = sand.u32 %s91, 1
          %s340 = smul.addr %s339, 24
          %s341 = scalar_lea.vmem [#allocation3], %s340
        $region116: #{_fused_forward.1} parent=111 // pred_fallthru
          _
      $region112: #{_fused_forward.1} parent=5 // pred_fallthru
        _
    $region6: #{_fused_forward.1} parent=1 // loop_footer
      %s13 = sadd.s32 1, %s9
    $region7: #{_fused_forward.1} parent=1 // loop_footer_branch
      %8 = sbr.rel target = $region3
    $region8: #{_fused_forward.1} parent=1 // loop_exit
      _

</llo_original>
